<compile_context>
chip_gen: v5e
topology: v5e:2x2
jax: 0.10.0
libtpu: 0.0.40
codegen_flags: <defaults>
</compile_context>

<pallas_src>
import functools
import math

import jax
import jax.numpy as jnp
from jax.experimental import pallas as pl
from jax.experimental.pallas import tpu as pltpu

HIDDEN = 64
LANE = 128            # vreg lane width: hidden dim padded to this
SUBLANE = 8           # f32 sublane width: batch tiles are multiples of this
_MIN_SPLIT_ROWS = 1024  # above this, force >= 2 grid steps (v7x has 2 TCs)


def _round_up(x, m):
    return (x + m - 1) // m * m


def _pow2_at_most(x):
    return 1 << (int(x).bit_length() - 1)


def _mlp_kernel(x_ref, w1_ref, b1_ref, w2_ref, b2_ref, w3_ref, b3_ref, o_ref):
    # fc1 + ReLU  (bf16 MXU matmul, f32 accumulation, f32 elementwise)
    x = x_ref[...].astype(jnp.bfloat16)
    h1 = jnp.dot(x, w1_ref[...], preferred_element_type=jnp.float32) + b1_ref[...]
    h1 = jnp.maximum(h1, 0.0).astype(jnp.bfloat16)

    # fc2 + ReLU
    h2 = jnp.dot(h1, w2_ref[...], preferred_element_type=jnp.float32) + b2_ref[...]
    h2 = jnp.maximum(h2, 0.0).astype(jnp.bfloat16)

    # fc3 (no activation) -- narrow (tm, action_size) store: the store is
    # masked (vst.msk) but HBM writeback drops ~32x vs a 128-lane f32 slab.
    o_ref[...] = (
        jnp.dot(h2, w3_ref[...], preferred_element_type=jnp.float32) + b3_ref[...]
    ).astype(o_ref.dtype)


@functools.partial(jax.jit, static_argnames=("action_size", "tile_m"))
def network_forward(state, params, *, action_size, tile_m=2048):
    """Fused 3-layer MLP forward pass as one Pallas kernel.

    state:  (B, state_size) float32
    params: dict from init_params() (bf16 lane-padded weights, f32 biases)
    Returns (B, action_size) float32.
    """
    w1, b1 = params["w1"], params["b1"]
    w2, b2 = params["w2"], params["b2"]
    w3, b3 = params["w3"], params["b3"]

    B, S = state.shape
    Hp = w1.shape[1]          # padded hidden width (128)
    A = w3.shape[1]           # action_size (NOT lane-padded: narrow output)
    assert A == action_size

    # Batch bucketing: pad to the next power of two (>= SUBLANE) so DQN's
    # alternation between tiny eval batches and large train batches only hits
    # a small, fixed set of kernel shapes. Padded rows are zeros (inert).
    Bp = max(SUBLANE, pl.next_power_of_2(B))
    if Bp != B:
        state = jnp.pad(state, ((0, Bp - B), (0, 0)))

    # Batch tile: as large as possible (per-grid-step overhead ~0.35 us
    # dominates this kernel), power of two so it divides Bp exactly.
    tm = max(SUBLANE, min(_pow2_at_most(tile_m), Bp))
    # Guarantee >= 2 grid steps for big batches so both v7x TensorCores get
    # work when the batch axis is sharded across cores.
    if Bp // tm < 2 and Bp >= _MIN_SPLIT_ROWS:
        tm = Bp // 2
    grid = (Bp // tm,)

    # Weights / biases: constant index_map -> fetched once, VMEM-resident.
    const = lambda arr: pl.BlockSpec(arr.shape, lambda i: (0, 0))

    flops = 2 * Bp * (S * Hp + Hp * Hp + Hp * A)
    bytes_accessed = (
        Bp * S * 4
        + sum(int(a.size) * a.dtype.itemsize for a in (w1, b1, w2, b2, w3, b3))
        + Bp * A * 4
    )

    out = pl.pallas_call(
        _mlp_kernel,
        out_shape=jax.ShapeDtypeStruct((Bp, A), jnp.float32),
        grid=grid,
        in_specs=[
            pl.BlockSpec((tm, S), lambda i: (i, 0)),   # activation stream
            const(w1), const(b1),
            const(w2), const(b2),
            const(w3), const(b3),
        ],
        out_specs=pl.BlockSpec((tm, A), lambda i: (i, 0)),
        compiler_params=pltpu.CompilerParams(
            # Batch tiles are independent -> shardable across v7x's 2 TCs.
            dimension_semantics=("parallel",),
        ),
        cost_estimate=pl.CostEstimate(
            flops=flops, transcendentals=0, bytes_accessed=bytes_accessed
        ),
    )(state, w1, b1, w2, b2, w3, b3)

    return out[:B]


def init_params(key, state_size, action_size, hidden=HIDDEN):
    """PyTorch nn.Linear-style init (U(-1/sqrt(fan_in), 1/sqrt(fan_in))).

    Hidden dim is zero-padded to the 128-lane width; fc3's output dim is kept
    at action_size (narrow output). Weights bf16, biases f32.
    """
    keys = jax.random.split(key, 6)
    Hp = _round_up(hidden, LANE)

    def linear(kw, kb, fan_in, fan_out):
        bound = 1.0 / math.sqrt(fan_in)
        w = jax.random.uniform(kw, (fan_in, fan_out), jnp.float32,
                               minval=-bound, maxval=bound)
        b = jax.random.uniform(kb, (1, fan_out), jnp.float32,
                               minval=-bound, maxval=bound)
        return w, b

    w1, b1 = linear(keys[0], keys[1], state_size, hidden)
    w2, b2 = linear(keys[2], keys[3], hidden, hidden)
    w3, b3 = linear(keys[4], keys[5], hidden, action_size)

    # Zero-pad hidden features / contraction dims to 128 lanes (inert).
    w1 = jnp.pad(w1, ((0, 0), (0, Hp - hidden)))
    b1 = jnp.pad(b1, ((0, 0), (0, Hp - hidden)))
    w2 = jnp.pad(w2, ((0, Hp - hidden), (0, Hp - hidden)))
    b2 = jnp.pad(b2, ((0, 0), (0, Hp - hidden)))
    w3 = jnp.pad(w3, ((0, Hp - hidden), (0, 0)))   # output dim stays action_size

    bf16 = lambda a: a.astype(jnp.bfloat16)
    return {
        "w1": bf16(w1), "b1": b1,
        "w2": bf16(w2), "b2": b2,
        "w3": bf16(w3), "b3": b3,
    }


def _ref_forward(x, p):
    """Pure-JAX reference with the same bf16-weight / f32-accumulate math."""
    h1 = jnp.maximum(
        jnp.dot(x.astype(jnp.bfloat16), p["w1"],
                preferred_element_type=jnp.float32) + p["b1"], 0.0)
    h2 = jnp.maximum(
        jnp.dot(h1.astype(jnp.bfloat16), p["w2"],
                preferred_element_type=jnp.float32) + p["b2"], 0.0)
    return (jnp.dot(h2.astype(jnp.bfloat16), p["w3"],
                    preferred_element_type=jnp.float32) + p["b3"])


if __name__ == "__main__":
    key = jax.random.PRNGKey(0)
    k_p, k_x1, k_x2 = jax.random.split(key, 3)

    state_size, action_size = 8, 4
    params = init_params(k_p, state_size, action_size)

    # Small eval-style batch: single tile, no padding (8 is a power of two).
    batch = 8
    state = jax.random.normal(k_x1, (batch, state_size), dtype=jnp.float32)
    out = jax.block_until_ready(
        network_forward(state, params, action_size=action_size))
    ref = _ref_forward(state, params)
    assert out.shape == (batch, action_size)
    assert jnp.allclose(out, ref, atol=1e-2, rtol=1e-2), "mismatch (small batch)"

    # Awkward train-style batch: exercises power-of-two bucketing (520 -> 1024)
    # and the >=2-tile split for v7x megacore (1024 -> 2 tiles of 512 rows).
    big_batch = 520
    state_big = jax.random.normal(k_x2, (big_batch, state_size), dtype=jnp.float32)
    out_big = jax.block_until_ready(
        network_forward(state_big, params, action_size=action_size))
    ref_big = _ref_forward(state_big, params)
    assert out_big.shape == (big_batch, action_size)
    assert jnp.allclose(out_big, ref_big, atol=1e-2, rtol=1e-2), "mismatch (big batch)"

    print("KERNEL_OK")
</pallas_src>

<mosaic_0001>
module attributes {stable_mosaic.version = 11 : i64} {
  func.func @_mlp_kernel(%arg0: i32, %arg1: memref<8x8xf32, #tpu.memory_space<vmem>>, %arg2: memref<8x128xbf16, #tpu.memory_space<vmem>>, %arg3: memref<1x128xf32, #tpu.memory_space<vmem>>, %arg4: memref<128x128xbf16, #tpu.memory_space<vmem>>, %arg5: memref<1x128xf32, #tpu.memory_space<vmem>>, %arg6: memref<128x4xbf16, #tpu.memory_space<vmem>>, %arg7: memref<1x4xf32, #tpu.memory_space<vmem>>, %arg8: memref<8x4xf32, #tpu.memory_space<vmem>>) attributes {dimension_semantics = [#tpu.dimension_semantics<parallel>], iteration_bounds = array<i64: 1>, scalar_prefetch = 0 : i64, scratch_operands = 0 : i64, tpu.core_type = #tpu.core_type<tc>, window_params = [{transform_indices = @transform_0, window_bounds = array<i64: 8, 8>}, {pipeline_mode = #tpu.pipeline_mode<synchronous>, transform_indices = @transform_1, window_bounds = array<i64: 8, 128>}, {pipeline_mode = #tpu.pipeline_mode<synchronous>, transform_indices = @transform_2, window_bounds = array<i64: 1, 128>}, {pipeline_mode = #tpu.pipeline_mode<synchronous>, transform_indices = @transform_3, window_bounds = array<i64: 128, 128>}, {pipeline_mode = #tpu.pipeline_mode<synchronous>, transform_indices = @transform_4, window_bounds = array<i64: 1, 128>}, {pipeline_mode = #tpu.pipeline_mode<synchronous>, transform_indices = @transform_5, window_bounds = array<i64: 128, 4>}, {pipeline_mode = #tpu.pipeline_mode<synchronous>, transform_indices = @transform_6, window_bounds = array<i64: 1, 4>}, {transform_indices = @transform_7, window_bounds = array<i64: 8, 4>}]} {
    %c0 = arith.constant 0 : index
    %c0_0 = arith.constant 0 : index
    %0 = vector.load %arg1[%c0, %c0_0] : memref<8x8xf32, #tpu.memory_space<vmem>>, vector<8x8xf32>
    %1 = arith.truncf %0 : vector<8x8xf32> to vector<8x8xbf16>
    %c0_1 = arith.constant 0 : index
    %c0_2 = arith.constant 0 : index
    %2 = vector.load %arg2[%c0_1, %c0_2] : memref<8x128xbf16, #tpu.memory_space<vmem>>, vector<8x128xbf16>
    %cst = arith.constant dense<0.000000e+00> : vector<8x128xf32>
    %3 = tpu.matmul %1, %2, %cst {dimension_numbers = #tpu.dot_dimension_numbers<[1], [0], [0], [1], [0, 0, 1, 1], [], []>} : vector<8x8xbf16>, vector<8x128xbf16>, vector<8x128xf32> -> vector<8x128xf32>
    %c0_3 = arith.constant 0 : index
    %c0_4 = arith.constant 0 : index
    %4 = vector.load %arg3[%c0_3, %c0_4] : memref<1x128xf32, #tpu.memory_space<vmem>>, vector<1x128xf32>
    %5 = vector.broadcast %4 : vector<1x128xf32> to vector<8x128xf32>
    %6 = arith.addf %3, %5 : vector<8x128xf32>
    %cst_5 = arith.constant 0.000000e+00 : f32
    %7 = vector.broadcast %cst_5 : f32 to vector<8x128xf32>
    %8 = arith.maximumf %6, %7 : vector<8x128xf32>
    %9 = arith.truncf %8 : vector<8x128xf32> to vector<8x128xbf16>
    %c0_6 = arith.constant 0 : index
    %c0_7 = arith.constant 0 : index
    %10 = vector.load %arg4[%c0_6, %c0_7] : memref<128x128xbf16, #tpu.memory_space<vmem>>, vector<128x128xbf16>
    %cst_8 = arith.constant dense<0.000000e+00> : vector<8x128xf32>
    %11 = tpu.matmul %9, %10, %cst_8 {dimension_numbers = #tpu.dot_dimension_numbers<[1], [0], [0], [1], [0, 0, 1, 1], [], []>} : vector<8x128xbf16>, vector<128x128xbf16>, vector<8x128xf32> -> vector<8x128xf32>
    %c0_9 = arith.constant 0 : index
    %c0_10 = arith.constant 0 : index
    %12 = vector.load %arg5[%c0_9, %c0_10] : memref<1x128xf32, #tpu.memory_space<vmem>>, vector<1x128xf32>
    %13 = vector.broadcast %12 : vector<1x128xf32> to vector<8x128xf32>
    %14 = arith.addf %11, %13 : vector<8x128xf32>
    %cst_11 = arith.constant 0.000000e+00 : f32
    %15 = vector.broadcast %cst_11 : f32 to vector<8x128xf32>
    %16 = arith.maximumf %14, %15 : vector<8x128xf32>
    %17 = arith.truncf %16 : vector<8x128xf32> to vector<8x128xbf16>
    %c0_12 = arith.constant 0 : index
    %c0_13 = arith.constant 0 : index
    %18 = vector.load %arg6[%c0_12, %c0_13] : memref<128x4xbf16, #tpu.memory_space<vmem>>, vector<128x4xbf16>
    %cst_14 = arith.constant dense<0.000000e+00> : vector<8x4xf32>
    %19 = tpu.matmul %17, %18, %cst_14 {dimension_numbers = #tpu.dot_dimension_numbers<[1], [0], [0], [1], [0, 0, 1, 1], [], []>} : vector<8x128xbf16>, vector<128x4xbf16>, vector<8x4xf32> -> vector<8x4xf32>
    %c0_15 = arith.constant 0 : index
    %c0_16 = arith.constant 0 : index
    %20 = vector.load %arg7[%c0_15, %c0_16] : memref<1x4xf32, #tpu.memory_space<vmem>>, vector<1x4xf32>
    %21 = vector.broadcast %20 : vector<1x4xf32> to vector<8x4xf32>
    %22 = arith.addf %19, %21 : vector<8x4xf32>
    %c0_17 = arith.constant 0 : index
    %c0_18 = arith.constant 0 : index
    %23 = vector.load %arg8[%c0_17, %c0_18] : memref<8x4xf32, #tpu.memory_space<vmem>>, vector<8x4xf32>
    tpu.vector_store %arg8[%c0_17, %c0_18], %22 {strides = array<i32>} : memref<8x4xf32, #tpu.memory_space<vmem>>, vector<8x4xf32>,
    return
  }
  func.func @transform_0(%arg0: i32) -> (i32, i32) {
    %c0_i32 = arith.constant 0 : i32
    %c0_i32_0 = arith.constant 0 : i32
    return %arg0, %c0_i32 : i32, i32
  }
  func.func @transform_1(%arg0: i32) -> (i32, i32) {
    %c0_i32 = arith.constant 0 : i32
    %c0_i32_0 = arith.constant 0 : i32
    %c0_i32_1 = arith.constant 0 : i32
    return %c0_i32, %c0_i32_0 : i32, i32
  }
  func.func @transform_2(%arg0: i32) -> (i32, i32) {
    %c0_i32 = arith.constant 0 : i32
    %c0_i32_0 = arith.constant 0 : i32
    %c0_i32_1 = arith.constant 0 : i32
    return %c0_i32, %c0_i32_0 : i32, i32
  }
  func.func @transform_3(%arg0: i32) -> (i32, i32) {
    %c0_i32 = arith.constant 0 : i32
    %c0_i32_0 = arith.constant 0 : i32
    %c0_i32_1 = arith.constant 0 : i32
    return %c0_i32, %c0_i32_0 : i32, i32
  }
  func.func @transform_4(%arg0: i32) -> (i32, i32) {
    %c0_i32 = arith.constant 0 : i32
    %c0_i32_0 = arith.constant 0 : i32
    %c0_i32_1 = arith.constant 0 : i32
    return %c0_i32, %c0_i32_0 : i32, i32
  }
  func.func @transform_5(%arg0: i32) -> (i32, i32) {
    %c0_i32 = arith.constant 0 : i32
    %c0_i32_0 = arith.constant 0 : i32
    %c0_i32_1 = arith.constant 0 : i32
    return %c0_i32, %c0_i32_0 : i32, i32
  }
  func.func @transform_6(%arg0: i32) -> (i32, i32) {
    %c0_i32 = arith.constant 0 : i32
    %c0_i32_0 = arith.constant 0 : i32
    %c0_i32_1 = arith.constant 0 : i32
    return %c0_i32, %c0_i32_0 : i32, i32
  }
  func.func @transform_7(%arg0: i32) -> (i32, i32) {
    %c0_i32 = arith.constant 0 : i32
    %c0_i32_0 = arith.constant 0 : i32
    return %arg0, %c0_i32 : i32, i32
  }
}

</mosaic_0001>

<llo_original>
// kernel: network_forward.1
$region0: #{network_forward.1}
  #allocation0 [shape = 'u32[]', space=smem, size = 0x4, offset = 0x4, fixed_abs, tag = 'smem constant byte address 0x4 - core index']
  #allocation1 [shape = 'u32[72,128]{1,0:T(1,128)}', space=vmem, size = 0x9000, scoped, tag = 'internal scratch']
  %s0 = inlined_call_operand.hbm [shape: f32[8,8], index: 0, kind: input, shape index: {}]
  %s1 = inlined_call_operand.vmem [shape: bf16[8,128], index: 1, kind: input, shape index: {}]
  %s2 = inlined_call_operand.vmem [shape: f32[1,128], index: 2, kind: input, shape index: {}]
  %s3 = inlined_call_operand.vmem [shape: bf16[128,128], index: 3, kind: input, shape index: {}]
  %s4 = inlined_call_operand.hbm [shape: f32[1,128], index: 4, kind: input, shape index: {}]
  %s5 = inlined_call_operand.vmem [shape: bf16[128,4], index: 5, kind: input, shape index: {}]
  %s6 = inlined_call_operand.hbm [shape: f32[1,4], index: 6, kind: input, shape index: {}]
  %s7 = inlined_call_operand.vmem [shape: f32[8,4], index: 7, kind: output, shape index: {}]
  %s8 = sld [smem:[#allocation0]]
  $region50: #{network_forward.1} parent=0
    _
  %s10 = ssub.s32 1, %s8
  %s11 = scalar_select 0, %s10, %s8
  $region1: #{network_forward.1} parent=0
    #allocation2 [shape = 'u8[4096]{0}', space=vmem, size = 0x1000, scoped, tag = 'input window, operand 0, single buffered']
    #allocation3 [shape = 's32[1]{0}', space=sflag, size = 0x4, scoped, tag = 'scoped memory for network_forward.1']
    #allocation4 [shape = 'u8[512]{0}', space=vmem, size = 0x400, scoped, tag = 'input window, operand 4, single buffered']
    #allocation5 [shape = 's32[1]{0}', space=sflag, size = 0x4, scoped, tag = 'scoped memory for network_forward.1']
    #allocation6 [shape = 'u8[512]{0}', space=vmem, size = 0x400, scoped, tag = 'input window, operand 6, single buffered']
    %12 = vsyncpa [#allocation3], 0
    %13 = vsyncpa [#allocation5], 0
    // Predicated region
    $region2: #{network_forward.1} parent=1 // pred_check
      _
    $region3: #{network_forward.1} parent=1 // pred_check_branch
      %15 = sbr.rel (0) target = $region5
    $region4: #{network_forward.1} parent=1 // pred_region
      %17 = vsyncadd [#allocation3], 0
      %s19 = sshll.u32 %s0, 4
      %s20 = int_to_ptr.hbm [resolvable:$true] %s19
      %s21 = sshll.u32 [#allocation2], 4
      %s22 = int_to_ptr.vmem [resolvable:$true] %s21
      %24 = dma.hbm_to_vmem [thread:$0]  %s20, 128, %s22, [#allocation3]
    $region5: #{network_forward.1} parent=1 // pred_fallthru
      _
    // Predicated region
    $region6: #{network_forward.1} parent=1 // pred_check
      _
    $region7: #{network_forward.1} parent=1 // pred_check_branch
      %26 = sbr.rel (0) target = $region9
    $region8: #{network_forward.1} parent=1 // pred_region
      _
    $region9: #{network_forward.1} parent=1 // pred_fallthru
      _
    // Predicated region
    $region10: #{network_forward.1} parent=1 // pred_check
      _
    $region11: #{network_forward.1} parent=1 // pred_check_branch
      %28 = sbr.rel (0) target = $region13
    $region12: #{network_forward.1} parent=1 // pred_region
      _
    $region13: #{network_forward.1} parent=1 // pred_fallthru
      _
    // Predicated region
    $region14: #{network_forward.1} parent=1 // pred_check
      _
    $region15: #{network_forward.1} parent=1 // pred_check_branch
      %30 = sbr.rel (0) target = $region17
    $region16: #{network_forward.1} parent=1 // pred_region
      _
    $region17: #{network_forward.1} parent=1 // pred_fallthru
      _
    // Predicated region
    $region18: #{network_forward.1} parent=1 // pred_check
      _
    $region19: #{network_forward.1} parent=1 // pred_check_branch
      %32 = sbr.rel (0) target = $region21
    $region20: #{network_forward.1} parent=1 // pred_region
      %34 = vsyncadd [#allocation5], 0
      %s36 = sshll.u32 %s4, 4
      %s37 = int_to_ptr.hbm [resolvable:$true] %s36
      %s38 = sshll.u32 [#allocation4], 4
      %s39 = int_to_ptr.vmem [resolvable:$true] %s38
      %41 = dma.hbm_to_vmem [thread:$0]  %s37, 16, %s39, [#allocation5]
    $region21: #{network_forward.1} parent=1 // pred_fallthru
      _
    // Predicated region
    $region22: #{network_forward.1} parent=1 // pred_check
      _
    $region23: #{network_forward.1} parent=1 // pred_check_branch
      %43 = sbr.rel (0) target = $region25
    $region24: #{network_forward.1} parent=1 // pred_region
      _
    $region25: #{network_forward.1} parent=1 // pred_fallthru
      _
    // Predicated region
    $region26: #{network_forward.1} parent=1 // pred_check
      _
    $region27: #{network_forward.1} parent=1 // pred_check_branch
      %45 = sbr.rel (0) target = $region29
    $region28: #{network_forward.1} parent=1 // pred_region
      %47 = vsyncadd [#allocation5], 0
      %s49 = sshll.u32 %s6, 4
      %s50 = int_to_ptr.hbm [resolvable:$true] %s49
      %s51 = sshll.u32 [#allocation6], 4
      %s52 = int_to_ptr.vmem [resolvable:$true] %s51
      %54 = dma.hbm_to_vmem [thread:$0]  %s50, 16, %s52, [#allocation5]
    $region29: #{network_forward.1} parent=1 // pred_fallthru
      _
    // Predicated region
    $region30: #{network_forward.1} parent=1 // pred_check
      _
    $region31: #{network_forward.1} parent=1 // pred_check_branch
      %56 = sbr.rel (0) target = $region33
    $region32: #{network_forward.1} parent=1 // pred_region
      %58 = dma.done [#allocation3], 128
    $region33: #{network_forward.1} parent=1 // pred_fallthru
      _
    // Predicated region
    $region34: #{network_forward.1} parent=1 // pred_check
      _
    $region35: #{network_forward.1} parent=1 // pred_check_branch
      %60 = sbr.rel (0) target = $region37
    $region36: #{network_forward.1} parent=1 // pred_region
      %62 = dma.done [#allocation5], 16
    $region37: #{network_forward.1} parent=1 // pred_fallthru
      _
    // Predicated region
    $region38: #{network_forward.1} parent=1 // pred_check
      _
    $region39: #{network_forward.1} parent=1 // pred_check_branch
      %64 = sbr.rel (0) target = $region41
    $region40: #{network_forward.1} parent=1 // pred_region
      %66 = dma.done [#allocation5], 16
    $region41: #{network_forward.1} parent=1 // pred_fallthru
      _
    %v68 = vld [vmem:[#allocation2] sm:$0xff]
    %v69 = vpack.c.bf16 %v68, %v68
    %v70 = vld [vmem:[%s1] sm:$0xf]
    %v71 = vld [vmem:[%s2] sm:$0x1]
    %v73 = vperm.slane %v71, 0
    %vm75 = vcmask 64512
    %v77 = vsel %vm75, %v69, 0
    %vm79 = vcmask 1043456
    %v81 = vsel %vm79, %v70, 0
    %83 = vmatpush.bf16.msra.mxu0 0
    %84 = vmatpush.bf16.msra.mxu0 0
    %85 = vmatpush.bf16.msra.mxu0 0
    %86 = vmatpush.bf16.msra.mxu0 0
    %87 = vmatpush.bf16.msra.mxu0 0
    %88 = vmatpush.bf16.msra.mxu0 0
    %89 = vmatpush.bf16.msra.mxu0 0
    %90 = vmatpush.bf16.msra.mxu0 %v81
    %91 = vmatmul.bf16.gmra.mxu0 %v77
    %v92 = vpop.f32.mrf.mxu0
    %v93 = vadd.f32 %v73, %v92
    %v94 = vpop.f32.mrf.mxu0
    %95 = vdwg.mxu0
    %v96 = vmax.f32 %v93, 0.0
    %v97 = vpack.c.bf16 %v96, %v96
    %v98 = vld [vmem:[%s3] sm:$0xf]
    %v99 = vld [vmem:[%s3 + $0x4] sm:$0xf]
    %v100 = vld [vmem:[%s3 + $0x8] sm:$0xf]
    %v101 = vld [vmem:[%s3 + $0xc] sm:$0xf]
    %v102 = vld [vmem:[%s3 + $0x10] sm:$0xf]
    %v103 = vld [vmem:[%s3 + $0x14] sm:$0xf]
    %v104 = vld [vmem:[%s3 + $0x18] sm:$0xf]
    %v105 = vld [vmem:[%s3 + $0x1c] sm:$0xf]
    %v106 = vld [vmem:[%s3 + $0x20] sm:$0xf]
    %v107 = vld [vmem:[%s3 + $0x24] sm:$0xf]
    %v108 = vld [vmem:[%s3 + $0x28] sm:$0xf]
    %v109 = vld [vmem:[%s3 + $0x2c] sm:$0xf]
    %v110 = vld [vmem:[%s3 + $0x30] sm:$0xf]
    %v111 = vld [vmem:[%s3 + $0x34] sm:$0xf]
    %v112 = vld [vmem:[%s3 + $0x38] sm:$0xf]
    %v113 = vld [vmem:[%s3 + $0x3c] sm:$0xf]
    %v114 = vld [vmem:[#allocation4] sm:$0x1]
    %v116 = vperm.slane %v114, 0
    %v134 = vunpack.c.l.b16 %v98
    %v135 = vunpack.c.l.b16 %v99
    %v136 = vunpack.c.l.b16 %v100
    %v137 = vunpack.c.l.b16 %v101
    %v138 = vunpack.c.l.b16 %v102
    %v139 = vunpack.c.l.b16 %v103
    %v140 = vunpack.c.l.b16 %v104
    %v141 = vunpack.c.l.b16 %v105
    %v142 = vunpack.c.l.b16 %v106
    %v143 = vunpack.c.l.b16 %v107
    %v144 = vunpack.c.l.b16 %v108
    %v145 = vunpack.c.l.b16 %v109
    %v146 = vunpack.c.l.b16 %v110
    %v147 = vunpack.c.l.b16 %v111
    %v148 = vunpack.c.l.b16 %v112
    %v149 = vunpack.c.l.b16 %v113
    %v150 = vpack.c.b16 %v135, %v134
    %v151 = vpack.c.b16 %v137, %v136
    %v152 = vpack.c.b16 %v139, %v138
    %v153 = vpack.c.b16 %v141, %v140
    %v154 = vpack.c.b16 %v143, %v142
    %v155 = vpack.c.b16 %v145, %v144
    %v156 = vpack.c.b16 %v147, %v146
    %v157 = vpack.c.b16 %v149, %v148
    %166 = vmatpush.bf16.msra.mxu0 %v157
    %167 = vmatpush.bf16.msra.mxu0 %v156
    %168 = vmatpush.bf16.msra.mxu0 %v155
    %169 = vmatpush.bf16.msra.mxu0 %v154
    %170 = vmatpush.bf16.msra.mxu0 %v153
    %171 = vmatpush.bf16.msra.mxu0 %v152
    %172 = vmatpush.bf16.msra.mxu0 %v151
    %173 = vmatpush.bf16.msra.mxu0 %v150
    %174 = vmatmul.bf16.gmra.mxu0 %v97
    %v175 = vpop.f32.mrf.mxu0
    %v176 = vadd.f32 %v116, %v175
    %v177 = vpop.f32.mrf.mxu0
    %178 = vdwg.mxu0
    %v179 = vmax.f32 %v176, 0.0
    %v180 = vpack.c.bf16 %v179, %v179
    %v181 = vld [vmem:[%s5] sm:$0xf]
    %v182 = vld [vmem:[%s5 + $0x4] sm:$0xf]
    %v183 = vld [vmem:[%s5 + $0x8] sm:$0xf]
    %v184 = vld [vmem:[%s5 + $0xc] sm:$0xf]
    %v185 = vld [vmem:[%s5 + $0x10] sm:$0xf]
    %v186 = vld [vmem:[%s5 + $0x14] sm:$0xf]
    %v187 = vld [vmem:[%s5 + $0x18] sm:$0xf]
    %v188 = vld [vmem:[%s5 + $0x1c] sm:$0xf]
    %v189 = vld [vmem:[%s5 + $0x20] sm:$0xf]
    %v190 = vld [vmem:[%s5 + $0x24] sm:$0xf]
    %v191 = vld [vmem:[%s5 + $0x28] sm:$0xf]
    %v192 = vld [vmem:[%s5 + $0x2c] sm:$0xf]
    %v193 = vld [vmem:[%s5 + $0x30] sm:$0xf]
    %v194 = vld [vmem:[%s5 + $0x34] sm:$0xf]
    %v195 = vld [vmem:[%s5 + $0x38] sm:$0xf]
    %v196 = vld [vmem:[%s5 + $0x3c] sm:$0xf]
    %v197 = vld [vmem:[#allocation6] sm:$0x1]
    %v199 = vperm.slane %v197, 0
    %v217 = vunpack.c.l.b16 %v181
    %v218 = vunpack.c.l.b16 %v182
    %v219 = vunpack.c.l.b16 %v183
    %v220 = vunpack.c.l.b16 %v184
    %v221 = vunpack.c.l.b16 %v185
    %v222 = vunpack.c.l.b16 %v186
    %v223 = vunpack.c.l.b16 %v187
    %v224 = vunpack.c.l.b16 %v188
    %v225 = vunpack.c.l.b16 %v189
    %v226 = vunpack.c.l.b16 %v190
    %v227 = vunpack.c.l.b16 %v191
    %v228 = vunpack.c.l.b16 %v192
    %v229 = vunpack.c.l.b16 %v193
    %v230 = vunpack.c.l.b16 %v194
    %v231 = vunpack.c.l.b16 %v195
    %v232 = vunpack.c.l.b16 %v196
    %v233 = vpack.c.b16 %v218, %v217
    %v234 = vpack.c.b16 %v220, %v219
    %v235 = vpack.c.b16 %v222, %v221
    %v236 = vpack.c.b16 %v224, %v223
    %v237 = vpack.c.b16 %v226, %v225
    %v238 = vpack.c.b16 %v228, %v227
    %v239 = vpack.c.b16 %v230, %v229
    %v240 = vpack.c.b16 %v232, %v231
    %249 = vmatpush.bf16.msra.mxu0 %v240
    %250 = vmatpush.bf16.msra.mxu0 %v239
    %251 = vmatpush.bf16.msra.mxu0 %v238
    %252 = vmatpush.bf16.msra.mxu0 %v237
    %253 = vmatpush.bf16.msra.mxu0 %v236
    %254 = vmatpush.bf16.msra.mxu0 %v235
    %255 = vmatpush.bf16.msra.mxu0 %v234
    %256 = vmatpush.bf16.msra.mxu0 %v233
    %257 = vmatmul.bf16.gmra.mxu0 %v180
    %v258 = vpop.f32.mrf.mxu0
    %v259 = vadd.f32 %v199, %v258
    %v260 = vpop.f32.mrf.mxu0
    %261 = vdwg.mxu0
    %vm262 = vcmask 31744
    %263 = vst.msk [vmem:[%s7] sm:$0xff] %vm262, %v259
    // Predicated region
    $region42: #{network_forward.1} parent=1 // pred_check
      _
    $region43: #{network_forward.1} parent=1 // pred_check_branch
      %265 = sbr.rel (0) target = $region45
    $region44: #{network_forward.1} parent=1 // pred_region
      _
    $region45: #{network_forward.1} parent=1 // pred_fallthru
      _
    // Predicated region
    $region46: #{network_forward.1} parent=1 // pred_check
      _
    $region47: #{network_forward.1} parent=1 // pred_check_branch
      %267 = sbr.rel (0) target = $region49
    $region48: #{network_forward.1} parent=1 // pred_region
      _
    $region49: #{network_forward.1} parent=1 // pred_fallthru
      _
    %268 = vsyncpa [#allocation3], 1
    %269 = vsyncpa [#allocation5], 1

</llo_original>
